<compile_context>
chip_gen: v6e
topology: v6e:2x2x1
jax: 0.10.0
libtpu: 0.0.40
codegen_flags: <defaults>
</compile_context>

<pallas_src>
import functools

import jax
import jax.numpy as jnp
from jax.experimental import pallas as pl
from jax.experimental.pallas import tpu as pltpu


def _round_up(x: int, m: int) -> int:
    return ((x + m - 1) // m) * m


def _linear_kernel(x_ref, w_ref, b_ref, o_ref, acc_ref):
    k = pl.program_id(2)

    @pl.when(k == 0)
    def _():
        acc_ref[...] = jnp.zeros_like(acc_ref)

    # MXU matmul with float32 accumulation.
    acc_ref[...] += jnp.dot(
        x_ref[...], w_ref[...], preferred_element_type=jnp.float32
    )

    @pl.when(k == pl.num_programs(2) - 1)
    def _():
        # Bias added exactly once, in the store epilogue.
        out = acc_ref[...] + b_ref[...].astype(jnp.float32)
        o_ref[...] = out.astype(o_ref.dtype)


def _pick_dim(dim: int, target: int, align: int):
    """Return (tile, padded_dim).

    If dim <= target, the tile equals the full dim (no padding needed; the
    TPU block constraint allows block == full array dim).  Otherwise use the
    aligned target tile and pad the dim up to a multiple of it.
    """
    if dim <= target:
        return dim, dim
    tile = (target // align) * align
    tile = max(tile, align)
    return tile, _round_up(dim, tile)


@jax.jit
def linear_encoder(x, w, b):
    """y = x @ w + b  with x:(..., In), w:(In, Out), b:(Out,)."""
    In, Out = w.shape
    assert x.shape[-1] == In and b.shape == (Out,)

    lead_shape = x.shape[:-1]
    x2 = x.reshape((-1, In))
    B = x2.shape[0]

    # Target tiles: MXU-friendly, lane-dense for large problems.
    tm, M_pad = _pick_dim(B, 256, 8)     # sublane axis
    tk, K_pad = _pick_dim(In, 512, 128)  # contracting axis
    tn, N_pad = _pick_dim(Out, 256, 128) # output lane axis

    # Zero-pad only when a dim exceeds its tile and is not a multiple of it.
    if (M_pad, K_pad) != (B, In):
        x2 = jnp.pad(x2, ((0, M_pad - B), (0, K_pad - In)))
    if (K_pad, N_pad) != (In, Out):
        w_p = jnp.pad(w, ((0, K_pad - In), (0, N_pad - Out)))
    else:
        w_p = w
    if N_pad != Out:
        b_p = jnp.pad(b, (0, N_pad - Out)).reshape(1, N_pad)
    else:
        b_p = b.reshape(1, N_pad)

    grid = (M_pad // tm, N_pad // tn, K_pad // tk)

    # VMEM budget: double-buffered x/w/b input tiles + double-buffered output
    # tile + f32 accumulator scratch, with 2x safety margin.  Clamp so the
    # same code is valid on v5e/v6e (128 MiB) and v7x (64 MiB physical).
    in_bytes = x2.dtype.itemsize
    out_bytes = x.dtype.itemsize
    vmem_est = (
        2 * (tm * tk + tk * tn + tn) * in_bytes
        + 2 * tm * tn * out_bytes
        + tm * tn * 4
    )
    vmem_limit = min(max(2 * vmem_est, 32 * 1024 * 1024), 60 * 1024 * 1024)

    y_p = pl.pallas_call(
        _linear_kernel,
        out_shape=jax.ShapeDtypeStruct((M_pad, N_pad), x.dtype),
        grid_spec=pltpu.PrefetchScalarGridSpec(
            num_scalar_prefetch=0,
            grid=grid,
            in_specs=[
                pl.BlockSpec((tm, tk), lambda i, j, k: (i, k)),   # x tile
                pl.BlockSpec((tk, tn), lambda i, j, k: (k, j)),   # w tile
                pl.BlockSpec((1, tn), lambda i, j, k: (0, j)),    # bias tile
            ],
            out_specs=pl.BlockSpec((tm, tn), lambda i, j, k: (i, j)),
            scratch_shapes=[pltpu.VMEM((tm, tn), jnp.float32)],
        ),
        compiler_params=pltpu.CompilerParams(
            dimension_semantics=("parallel", "parallel", "arbitrary"),
            vmem_limit_bytes=vmem_limit,
        ),
    )(x2, w_p, b_p)

    y = y_p[:B, :Out]
    return y.reshape(lead_shape + (Out,))


if __name__ == "__main__":
    # Small shapes consistent with nn.Linear(input_size, output_size).
    # NOTE: at this toy size the whole problem is launch-overhead bound;
    # the tiled structure pays off at realistic encoder batch/width.
    batch, input_size, output_size = 8, 32, 16

    key = jax.random.PRNGKey(0)
    kx, kw, kb = jax.random.split(key, 3)

    # Deterministic init mimicking nn.Linear defaults
    # (uniform in [-1/sqrt(fan_in), 1/sqrt(fan_in)]).
    bound = 1.0 / jnp.sqrt(jnp.float32(input_size))
    # PyTorch stores weight as (out, in); we keep it transposed (in, out).
    w = jax.random.uniform(kw, (input_size, output_size), jnp.float32, -bound, bound)
    b = jax.random.uniform(kb, (output_size,), jnp.float32, -bound, bound)
    x = jax.random.normal(kx, (batch, input_size), jnp.float32)

    y = linear_encoder(x, w, b)
    jax.block_until_ready(y)

    # Cross-check against plain JAX reference.
    y_ref = x @ w + b
    assert y.shape == (batch, output_size)
    assert jnp.allclose(y, y_ref, atol=1e-5, rtol=1e-5)

    # Also exercise a larger, padded/tiled path once for robustness.
    B2, In2, Out2 = 300, 640, 200
    x2 = jax.random.normal(kx, (B2, In2), jnp.float32)
    w2 = jax.random.normal(kw, (In2, Out2), jnp.float32) * 0.02
    b2 = jax.random.normal(kb, (Out2,), jnp.float32) * 0.02
    y2 = linear_encoder(x2, w2, b2)
    jax.block_until_ready(y2)
    assert jnp.allclose(y2, x2 @ w2 + b2, atol=1e-3, rtol=1e-3)

    print("KERNEL_OK")
</pallas_src>

<mosaic_0001>
module attributes {stable_mosaic.version = 11 : i64} {
  func.func @_linear_kernel(%arg0: i32, %arg1: i32, %arg2: i32, %arg3: memref<8x32xf32, #tpu.memory_space<vmem>>, %arg4: memref<32x16xf32, #tpu.memory_space<vmem>>, %arg5: memref<1x16xf32, #tpu.memory_space<vmem>>, %arg6: memref<8x16xf32, #tpu.memory_space<vmem>>, %arg7: memref<8x16xf32, #tpu.memory_space<vmem>>) attributes {dimension_semantics = [#tpu.dimension_semantics<parallel>, #tpu.dimension_semantics<parallel>, #tpu.dimension_semantics<arbitrary>], iteration_bounds = array<i64: 1, 1, 1>, scalar_prefetch = 0 : i64, scratch_operands = 1 : i64, tpu.core_type = #tpu.core_type<tc>, window_params = [{transform_indices = @transform_0, window_bounds = array<i64: 8, 32>}, {transform_indices = @transform_1, window_bounds = array<i64: 32, 16>}, {transform_indices = @transform_2, window_bounds = array<i64: 1, 16>}, {transform_indices = @transform_3, window_bounds = array<i64: 8, 16>}]} {
    %c0_i32 = arith.constant 0 : i32
    %0 = arith.cmpi eq, %arg2, %c0_i32 : i32
    %1 = arith.extui %0 : i1 to i32
    %c0_i32_0 = arith.constant 0 : i32
    %2 = arith.cmpi ne, %1, %c0_i32_0 : i32
    scf.if %2 {
      %cst_10 = arith.constant 0.000000e+00 : f32
      %12 = vector.broadcast %cst_10 : f32 to vector<8x16xf32>
      %c0_11 = arith.constant 0 : index
      %c0_12 = arith.constant 0 : index
      %13 = vector.load %arg7[%c0_11, %c0_12] : memref<8x16xf32, #tpu.memory_space<vmem>>, vector<8x16xf32>
      tpu.vector_store %arg7[%c0_11, %c0_12], %12 {strides = array<i32>} : memref<8x16xf32, #tpu.memory_space<vmem>>, vector<8x16xf32>,
    } else {
    }
    %c0 = arith.constant 0 : index
    %c0_1 = arith.constant 0 : index
    %3 = vector.load %arg7[%c0, %c0_1] : memref<8x16xf32, #tpu.memory_space<vmem>>, vector<8x16xf32>
    %c0_2 = arith.constant 0 : index
    %c0_3 = arith.constant 0 : index
    %4 = vector.load %arg3[%c0_2, %c0_3] : memref<8x32xf32, #tpu.memory_space<vmem>>, vector<8x32xf32>
    %c0_4 = arith.constant 0 : index
    %c0_5 = arith.constant 0 : index
    %5 = vector.load %arg4[%c0_4, %c0_5] : memref<32x16xf32, #tpu.memory_space<vmem>>, vector<32x16xf32>
    %cst = arith.constant dense<0.000000e+00> : vector<8x16xf32>
    %6 = tpu.matmul %4, %5, %cst {dimension_numbers = #tpu.dot_dimension_numbers<[1], [0], [0], [1], [0, 0, 1, 1], [], []>} : vector<8x32xf32>, vector<32x16xf32>, vector<8x16xf32> -> vector<8x16xf32>
    %7 = arith.addf %3, %6 : vector<8x16xf32>
    %c0_6 = arith.constant 0 : index
    %c0_7 = arith.constant 0 : index
    %8 = vector.load %arg7[%c0_6, %c0_7] : memref<8x16xf32, #tpu.memory_space<vmem>>, vector<8x16xf32>
    tpu.vector_store %arg7[%c0_6, %c0_7], %7 {strides = array<i32>} : memref<8x16xf32, #tpu.memory_space<vmem>>, vector<8x16xf32>,
    %c0_i32_8 = arith.constant 0 : i32
    %9 = arith.cmpi eq, %arg2, %c0_i32_8 : i32
    %10 = arith.extui %9 : i1 to i32
    %c0_i32_9 = arith.constant 0 : i32
    %11 = arith.cmpi ne, %10, %c0_i32_9 : i32
    scf.if %11 {
      %c0_10 = arith.constant 0 : index
      %c0_11 = arith.constant 0 : index
      %12 = vector.load %arg7[%c0_10, %c0_11] : memref<8x16xf32, #tpu.memory_space<vmem>>, vector<8x16xf32>
      %c0_12 = arith.constant 0 : index
      %c0_13 = arith.constant 0 : index
      %13 = vector.load %arg5[%c0_12, %c0_13] : memref<1x16xf32, #tpu.memory_space<vmem>>, vector<1x16xf32>
      %14 = vector.broadcast %13 : vector<1x16xf32> to vector<8x16xf32>
      %15 = arith.addf %12, %14 : vector<8x16xf32>
      %c0_14 = arith.constant 0 : index
      %c0_15 = arith.constant 0 : index
      %16 = vector.load %arg6[%c0_14, %c0_15] : memref<8x16xf32, #tpu.memory_space<vmem>>, vector<8x16xf32>
      tpu.vector_store %arg6[%c0_14, %c0_15], %15 {strides = array<i32>} : memref<8x16xf32, #tpu.memory_space<vmem>>, vector<8x16xf32>,
    } else {
    }
    return
  }
  func.func @transform_0(%arg0: i32, %arg1: i32, %arg2: i32) -> (i32, i32) {
    %c0_i32 = arith.constant 0 : i32
    return %arg0, %arg2 : i32, i32
  }
  func.func @transform_1(%arg0: i32, %arg1: i32, %arg2: i32) -> (i32, i32) {
    %c0_i32 = arith.constant 0 : i32
    return %arg2, %arg1 : i32, i32
  }
  func.func @transform_2(%arg0: i32, %arg1: i32, %arg2: i32) -> (i32, i32) {
    %c0_i32 = arith.constant 0 : i32
    %c0_i32_0 = arith.constant 0 : i32
    return %c0_i32, %arg1 : i32, i32
  }
  func.func @transform_3(%arg0: i32, %arg1: i32, %arg2: i32) -> (i32, i32) {
    %c0_i32 = arith.constant 0 : i32
    return %arg0, %arg1 : i32, i32
  }
}

</mosaic_0001>

<llo_original>
// kernel: linear_encoder.1
$region0: #{linear_encoder.1}
  #allocation0 [shape = 'u32[]', space=smem, size = 0x4, offset = 0x4, fixed_abs, tag = 'smem constant byte address 0x4 - core index']
  #allocation1 [shape = 'u32[144,128]{1,0:T(1,128)}', space=vmem, size = 0x12000, scoped, tag = 'internal scratch']
  #allocation2 [shape = 'f32[8,16]{1,0:T(8,128)}', space=vmem, size = 0x1000, scoped, tag = 'scratch operand']
  %s0 = inlined_call_operand.vmem [shape: f32[8,32], index: 0, kind: input, shape index: {}]
  %s1 = inlined_call_operand.vmem [shape: f32[32,16], index: 1, kind: input, shape index: {}]
  %s2 = inlined_call_operand.vmem [shape: f32[1,16], index: 2, kind: input, shape index: {}]
  %s3 = inlined_call_operand.hbm [shape: f32[8,16], index: 3, kind: output, shape index: {}]
  %s4 = sld [smem:[#allocation0]]
  $region30: #{linear_encoder.1} parent=0
    _
  %s6 = ssub.s32 1, %s4
  %s7 = scalar_select 0, %s6, %s4
  $region1: #{linear_encoder.1} parent=0
    #allocation3 [shape = 'u8[4096]{0}', space=vmem, size = 0x1000, scoped, tag = 'output window, operand 0, single buffered']
    #allocation4 [shape = 's32[1]{0}', space=sflag, size = 0x4, scoped, tag = 'scoped memory for linear_encoder.1']
    %8 = vsyncpa [#allocation4], 0
    // Predicated region
    $region2: #{linear_encoder.1} parent=1 // pred_check
      _
    $region3: #{linear_encoder.1} parent=1 // pred_check_branch
      %10 = sbr.rel (0) target = $region5
    $region4: #{linear_encoder.1} parent=1 // pred_region
      _
    $region5: #{linear_encoder.1} parent=1 // pred_fallthru
      _
    // Predicated region
    $region6: #{linear_encoder.1} parent=1 // pred_check
      _
    $region7: #{linear_encoder.1} parent=1 // pred_check_branch
      %12 = sbr.rel (0) target = $region9
    $region8: #{linear_encoder.1} parent=1 // pred_region
      _
    $region9: #{linear_encoder.1} parent=1 // pred_fallthru
      _
    // Predicated region
    $region10: #{linear_encoder.1} parent=1 // pred_check
      _
    $region11: #{linear_encoder.1} parent=1 // pred_check_branch
      %14 = sbr.rel (0) target = $region13
    $region12: #{linear_encoder.1} parent=1 // pred_region
      _
    $region13: #{linear_encoder.1} parent=1 // pred_fallthru
      _
    %p15 = scmp.eq.s32.totalorder 0, 0
    // Predicated region
    $region14: #{linear_encoder.1} parent=1 // pred_check
      %p16 = pneg %p15
    $region15: #{linear_encoder.1} parent=1 // pred_check_branch
      %18 = sbr.rel (%p16) target = $region17
    $region16: #{linear_encoder.1} parent=1 // pred_region
      %vm19 = vcmask 130048
      %20 = vst.msk [vmem:[#allocation2] sm:$0xff] %vm19, 0.0
    $region17: #{linear_encoder.1} parent=1 // pred_fallthru
      _
    %v21 = vld [vmem:[#allocation2] sm:$0xff]
    %v22 = vld [vmem:[%s0] sm:$0xff]
    %v23 = vld [vmem:[%s1] sm:$0xff]
    %v24 = vld [vmem:[%s1 + $0x8] sm:$0xff]
    %v25 = vld [vmem:[%s1 + $0x10] sm:$0xff]
    %v26 = vld [vmem:[%s1 + $0x18] sm:$0xff]
    %vm27 = vcmask 261120
    %v29 = vsel %vm27, %v22, 0
    %31 = vmatprep.subr.mxu0 0.0
    %32 = vmatpush1.msra.mxu0 0.0
    %33 = vmatprep.subr.mxu0 0.0
    %34 = vmatpush1.msra.mxu0 0.0
    %35 = vmatprep.subr.mxu0 0.0
    %36 = vmatpush1.msra.mxu0 0.0
    %37 = vmatprep.subr.mxu0 0.0
    %38 = vmatpush1.msra.mxu0 0.0
    %39 = vmatprep.subr.mxu0 0.0
    %40 = vmatpush1.msra.mxu0 0.0
    %41 = vmatprep.subr.mxu0 0.0
    %42 = vmatpush1.msra.mxu0 0.0
    %43 = vmatprep.subr.mxu0 0.0
    %44 = vmatpush1.msra.mxu0 0.0
    %45 = vmatprep.subr.mxu0 0.0
    %46 = vmatpush1.msra.mxu0 0.0
    %47 = vmatprep.subr.mxu0 0.0
    %48 = vmatpush1.msra.mxu0 0.0
    %49 = vmatprep.subr.mxu0 0.0
    %50 = vmatpush1.msra.mxu0 0.0
    %51 = vmatprep.subr.mxu0 0.0
    %52 = vmatpush1.msra.mxu0 0.0
    %53 = vmatprep.subr.mxu0 0.0
    %54 = vmatpush1.msra.mxu0 0.0
    %55 = vmatprep.subr.mxu0 0.0
    %56 = vmatpush1.msra.mxu0 %v26
    %57 = vmatprep.subr.mxu0 0.0
    %58 = vmatpush1.msra.mxu0 %v25
    %59 = vmatprep.subr.mxu0 0.0
    %60 = vmatpush1.msra.mxu0 %v24
    %61 = vmatprep.subr.mxu0 0.0
    %62 = vmatpush1.msra.mxu0 %v23
    %63 = vmatprep.subr.mxu0 0.0
    %64 = vmatpush2.msra.mxu0 0.0
    %65 = vmatprep.subr.mxu0 0.0
    %66 = vmatpush2.msra.mxu0 0.0
    %67 = vmatprep.subr.mxu0 0.0
    %68 = vmatpush2.msra.mxu0 0.0
    %69 = vmatprep.subr.mxu0 0.0
    %70 = vmatpush2.msra.mxu0 0.0
    %71 = vmatprep.subr.mxu0 0.0
    %72 = vmatpush2.msra.mxu0 0.0
    %73 = vmatprep.subr.mxu0 0.0
    %74 = vmatpush2.msra.mxu0 0.0
    %75 = vmatprep.subr.mxu0 0.0
    %76 = vmatpush2.msra.mxu0 0.0
    %77 = vmatprep.subr.mxu0 0.0
    %78 = vmatpush2.msra.mxu0 0.0
    %79 = vmatprep.subr.mxu0 0.0
    %80 = vmatpush2.msra.mxu0 0.0
    %81 = vmatprep.subr.mxu0 0.0
    %82 = vmatpush2.msra.mxu0 0.0
    %83 = vmatprep.subr.mxu0 0.0
    %84 = vmatpush2.msra.mxu0 0.0
    %85 = vmatprep.subr.mxu0 0.0
    %86 = vmatpush2.msra.mxu0 0.0
    %87 = vmatprep.subr.mxu0 0.0
    %88 = vmatpush2.msra.mxu0 0.0
    %89 = vmatprep.subr.mxu0 0.0
    %90 = vmatpush2.msra.mxu0 0.0
    %91 = vmatprep.subr.mxu0 0.0
    %92 = vmatpush2.msra.mxu0 0.0
    %93 = vmatprep.subr.mxu0 0.0
    %94 = vmatpush2.msra.mxu0 0.0
    %95 = vmatprep.mubr.f32.mxu0 0.0
    %96 = vmatmul.mubr.f32.gmra.mxu0 %v29
    %v97 = vpop.f32.mrf.mxu0
    %v98 = vadd.f32 0.0, %v97
    %v99 = vpop.f32.mrf.mxu0
    %100 = vdwg.mxu0
    %v101 = vadd.f32 %v21, %v98
    %vm102 = vcmask 130048
    %103 = vst.msk [vmem:[#allocation2] sm:$0xff] %vm102, %v101
    // Predicated region
    $region18: #{linear_encoder.1} parent=1 // pred_check
      %p104 = pneg %p15
    $region19: #{linear_encoder.1} parent=1 // pred_check_branch
      %106 = sbr.rel (%p104) target = $region21
    $region20: #{linear_encoder.1} parent=1 // pred_region
      %v107 = vld [vmem:[#allocation2] sm:$0xff]
      %v108 = vld [vmem:[%s2] sm:$0x1]
      %v110 = vlaneseq
      %v111 = vshrl.u32 %v110, 7
      %v112 = vsub.s32 0, %v111
      %v113 = vrot.slane %v108, %v112
      %v115 = vadd.f32 %v107, %v113
      %116 = vst.msk [vmem:[#allocation3] sm:$0xff] %vm102, %v115
    $region21: #{linear_encoder.1} parent=1 // pred_fallthru
      _
    // Predicated region
    $region22: #{linear_encoder.1} parent=1 // pred_check
      _
    $region23: #{linear_encoder.1} parent=1 // pred_check_branch
      %118 = sbr.rel (0) target = $region25
    $region24: #{linear_encoder.1} parent=1 // pred_region
      %s120 = ssub.s32 128, 128
      %121 = vsyncadd [#allocation4], %s120
      %s123 = sshll.u32 [#allocation3], 4
      %s124 = int_to_ptr.vmem [resolvable:$true] %s123
      %126 = dma.vmem_to_hbm [thread:$0]  %s124, 128, %s3, [#allocation4]
    $region25: #{linear_encoder.1} parent=1 // pred_fallthru
      _
    // Predicated region
    $region26: #{linear_encoder.1} parent=1 // pred_check
      _
    $region27: #{linear_encoder.1} parent=1 // pred_check_branch
      %128 = sbr.rel (0) target = $region29
    $region28: #{linear_encoder.1} parent=1 // pred_region
      %129 = dma.done [#allocation4], 128
    $region29: #{linear_encoder.1} parent=1 // pred_fallthru
      _
    %130 = vsyncpa [#allocation4], 1

</llo_original>
